<compile_context>
chip_gen: v6e
topology: v6e:2x2x1
jax: 0.10.0
libtpu: 0.0.40
codegen_flags: <defaults>
</compile_context>

<pallas_src>
import math

import jax
import jax.numpy as jnp
from jax.experimental import pallas as pl
from jax.experimental.pallas import tpu as pltpu


def _mgc_kernel(a_ref, w_ref, b_ref, x_ref, o_ref):
    # a_ref: (3*K*N, N)          all supports stacked, grid-invariant
    # w_ref: (3, K, tb*D, tb*O)  block-diagonal per-support weights, invariant
    # b_ref: (3, 1, tb*O)        bias tiled per batch column block, invariant
    # x_ref: (N, tb*D)           one batch tile, staged lane-dense
    # o_ref: (N, tb*O)           one batch tile, lane-dense output
    G = w_ref.shape[0]
    K = w_ref.shape[1]
    N = x_ref.shape[0]

    x = x_ref[...]
    # Stage 1: all 3*K support matmuls fused into a single wide MXU call.
    ax = jnp.dot(a_ref[...], x, preferred_element_type=jnp.float32)  # (3K*N, tb*D)
    ax = ax.astype(x.dtype)  # back to compute dtype for the second MXU stage

    acc = jnp.zeros(o_ref.shape, jnp.float32)
    for g in range(G):                                  # 3 graphs (gcn1/2/3)
        gout = jnp.zeros(o_ref.shape, jnp.float32)
        for k in range(K):                              # K supports
            r0 = (g * K + k) * N                        # static, N-aligned slice
            gout = gout + jnp.dot(ax[r0:r0 + N, :], w_ref[g, k],
                                  preferred_element_type=jnp.float32)
        gout = gout + b_ref[g]                          # (1, tb*O) broadcast
        acc = acc + jnp.maximum(gout, 0.0)              # ReLU then sum-aggregate
    o_ref[...] = acc.astype(o_ref.dtype)


def _pick_batch_tile(B, D, O, block_b):
    # Column-tiling the staged batch requires tb*D and tb*O to be multiples of
    # 128 unless one tile covers the whole (padded) batch.
    t_d = 128 // math.gcd(128, D)
    t_o = 128 // math.gcd(128, O)
    unit = t_d * t_o // math.gcd(t_d, t_o)
    if B <= max(block_b, unit):
        return B
    return max(unit, (block_b // unit) * unit)


def multi_graph_conv(x, A, W, b, *, block_b=8, compute_dtype=jnp.bfloat16):
    """x: (B,N,D); A: (3,K,N,N); W: (3,K*D,O); b: (3,1,O) -> (B,N,O)."""
    B, N, D = x.shape
    G, K, _, _ = A.shape
    O = W.shape[-1]
    out_dtype = x.dtype

    tb = _pick_batch_tile(B, D, O, block_b)
    Bp = int(pl.cdiv(B, tb)) * tb
    if Bp != B:
        x = jnp.pad(x, ((0, Bp - B), (0, 0), (0, 0)))

    # Stage x lane-dense: columns [i*D:(i+1)*D] hold batch element i.
    x_stage = jnp.transpose(x, (1, 0, 2)).reshape(N, Bp * D).astype(compute_dtype)

    # Stack all 3*K supports into a single matmul LHS.
    a_flat = A.reshape(G * K * N, N).astype(compute_dtype)

    # Block-diagonal weights: one (N, tb*D) @ (tb*D, tb*O) dot applies the
    # per-batch (D, O) weight without any lane slicing in the kernel.
    w_gk = W.reshape(G, K, D, O)
    eye_tb = jnp.eye(tb, dtype=W.dtype)
    w_blk = jnp.einsum("bc,gkdo->gkbdco", eye_tb, w_gk)
    w_blk = w_blk.reshape(G, K, tb * D, tb * O).astype(compute_dtype)

    # Bias tiled so output column block i (batch i) gets b[g].
    b_stage = jnp.tile(b, (1, 1, tb)).astype(jnp.float32)  # (G, 1, tb*O)

    # VMEM budget: invariant operands + double-buffered tiles + intermediates.
    cbytes = jnp.dtype(compute_dtype).itemsize
    obytes = jnp.dtype(out_dtype).itemsize
    needed = (
        2 * (G * K * N * N) * cbytes            # A (pipeline buffers)
        + 2 * (G * K * tb * D * tb * O) * cbytes  # block-diagonal W
        + 2 * (G * tb * O) * 4                  # bias
        + 2 * (N * tb * D) * cbytes             # x tile
        + 2 * (N * tb * O) * obytes             # out tile
        + 2 * (G * K * N * tb * D) * 4          # A@x intermediate (f32)
        + (4 << 20)                             # headroom
    )
    vmem_limit = int(min(max(needed, 16 << 20), 96 << 20))

    out_stage = pl.pallas_call(
        _mgc_kernel,
        out_shape=jax.ShapeDtypeStruct((N, Bp * O), out_dtype),
        grid_spec=pltpu.PrefetchScalarGridSpec(
            num_scalar_prefetch=0,
            grid=(Bp // tb,),
            in_specs=[
                pl.BlockSpec((G * K * N, N), lambda i: (0, 0)),            # A (invariant)
                pl.BlockSpec((G, K, tb * D, tb * O), lambda i: (0, 0, 0, 0)),  # W blocks
                pl.BlockSpec((G, 1, tb * O), lambda i: (0, 0, 0)),         # bias
                pl.BlockSpec((N, tb * D), lambda i: (0, i)),               # x batch tile
            ],
            out_specs=pl.BlockSpec((N, tb * O), lambda i: (0, i)),         # lane-dense out
        ),
        compiler_params=pltpu.CompilerParams(
            dimension_semantics=("parallel",),
            vmem_limit_bytes=vmem_limit,
        ),
    )(a_flat, w_blk, b_stage, x_stage)

    # (N, Bp*O) -> (B, N, O)
    out = jnp.transpose(out_stage.reshape(N, Bp, O), (1, 0, 2))
    return out[:B]


def _reference(x, A, W, b):
    # Pure-JAX reference of the same math for a correctness check.
    outs = []
    for g in range(3):
        ax = jnp.einsum("knm,bmd->bknd", A[g], x)                  # (B,K,N,D)
        B_, K_, N_, D_ = ax.shape
        feat = jnp.transpose(ax, (0, 2, 1, 3)).reshape(B_, N_, K_ * D_)
        out = jnp.einsum("bni,io->bno", feat, W[g]) + b[g][None]
        outs.append(jax.nn.relu(out))
    return outs[0] + outs[1] + outs[2]


if __name__ == "__main__":
    # Small deterministic shapes consistent with the module's forward:
    B, N, D, O, K = 2, 16, 4, 32, 3
    key = jax.random.PRNGKey(0)
    kx, ka, kw1, kw2, kw3 = jax.random.split(key, 5)

    x = jax.random.normal(kx, (B, N, D), dtype=jnp.float32)
    A = jax.random.normal(ka, (3, K, N, N), dtype=jnp.float32) * 0.1

    # Parameters: W_g ~ Xavier-normal (fan_in=K*D, fan_out=O), b_g = 0
    std = (2.0 / (K * D + O)) ** 0.5
    W = jnp.stack([
        std * jax.random.normal(kw1, (K * D, O), dtype=jnp.float32),
        std * jax.random.normal(kw2, (K * D, O), dtype=jnp.float32),
        std * jax.random.normal(kw3, (K * D, O), dtype=jnp.float32),
    ])
    b = jnp.zeros((3, 1, O), dtype=jnp.float32)

    ref = _reference(x, A, W, b)

    # f32 compute path: tight-tolerance semantics check.
    out_f32 = jax.block_until_ready(
        multi_graph_conv(x, A, W, b, compute_dtype=jnp.float32))
    assert out_f32.shape == (B, N, O)
    assert jnp.allclose(out_f32, ref, atol=5e-4, rtol=5e-4), "f32 mismatch vs reference"

    # bf16 compute path (perf configuration, f32 accumulation): looser tolerance.
    out_bf16 = jax.block_until_ready(
        multi_graph_conv(x, A, W, b, compute_dtype=jnp.bfloat16))
    assert out_bf16.shape == (B, N, O)
    assert jnp.allclose(out_bf16, ref, atol=3e-2, rtol=3e-2), "bf16 mismatch vs reference"

    print("KERNEL_OK")
</pallas_src>

<mosaic_0001>
module attributes {stable_mosaic.version = 11 : i64} {
  func.func @_mgc_kernel(%arg0: i32, %arg1: memref<144x16xf32, #tpu.memory_space<vmem>>, %arg2: memref<3x3x8x64xf32, #tpu.memory_space<vmem>>, %arg3: memref<3x1x64xf32, #tpu.memory_space<vmem>>, %arg4: memref<16x8xf32, #tpu.memory_space<vmem>>, %arg5: memref<16x64xf32, #tpu.memory_space<vmem>>) attributes {dimension_semantics = [#tpu.dimension_semantics<parallel>], iteration_bounds = array<i64: 1>, scalar_prefetch = 0 : i64, scratch_operands = 0 : i64, tpu.core_type = #tpu.core_type<tc>, window_params = [{pipeline_mode = #tpu.pipeline_mode<synchronous>, transform_indices = @transform_0, window_bounds = array<i64: 144, 16>}, {pipeline_mode = #tpu.pipeline_mode<synchronous>, transform_indices = @transform_1, window_bounds = array<i64: 3, 3, 8, 64>}, {pipeline_mode = #tpu.pipeline_mode<synchronous>, transform_indices = @transform_2, window_bounds = array<i64: 3, 1, 64>}, {transform_indices = @transform_3, window_bounds = array<i64: 16, 8>}, {transform_indices = @transform_4, window_bounds = array<i64: 16, 64>}]} {
    %c0 = arith.constant 0 : index
    %c0_0 = arith.constant 0 : index
    %0 = vector.load %arg4[%c0, %c0_0] : memref<16x8xf32, #tpu.memory_space<vmem>>, vector<16x8xf32>
    %c0_1 = arith.constant 0 : index
    %c0_2 = arith.constant 0 : index
    %1 = vector.load %arg1[%c0_1, %c0_2] : memref<144x16xf32, #tpu.memory_space<vmem>>, vector<144x16xf32>
    %cst = arith.constant dense<0.000000e+00> : vector<144x8xf32>
    %2 = tpu.matmul %1, %0, %cst {dimension_numbers = #tpu.dot_dimension_numbers<[1], [0], [0], [1], [0, 0, 1, 1], [], []>} : vector<144x16xf32>, vector<16x8xf32>, vector<144x8xf32> -> vector<144x8xf32>
    %cst_3 = arith.constant 0.000000e+00 : f32
    %3 = vector.broadcast %cst_3 : f32 to vector<16x64xf32>
    %cst_4 = arith.constant 0.000000e+00 : f32
    %4 = vector.broadcast %cst_4 : f32 to vector<16x64xf32>
    %5 = vector.extract_strided_slice %2 {offsets = [0, 0], sizes = [16, 8], strides = [1, 1]} : vector<144x8xf32> to vector<16x8xf32>
    %c0_5 = arith.constant 0 : index
    %c0_6 = arith.constant 0 : index
    %c0_7 = arith.constant 0 : index
    %c0_8 = arith.constant 0 : index
    %6 = vector.load %arg2[%c0_5, %c0_6, %c0_7, %c0_8] : memref<3x3x8x64xf32, #tpu.memory_space<vmem>>, vector<1x1x8x64xf32>
    %7 = vector.shape_cast %6 : vector<1x1x8x64xf32> to vector<8x64xf32>
    %cst_9 = arith.constant dense<0.000000e+00> : vector<16x64xf32>
    %8 = tpu.matmul %5, %7, %cst_9 {dimension_numbers = #tpu.dot_dimension_numbers<[1], [0], [0], [1], [0, 0, 1, 1], [], []>} : vector<16x8xf32>, vector<8x64xf32>, vector<16x64xf32> -> vector<16x64xf32>
    %9 = arith.addf %4, %8 : vector<16x64xf32>
    %10 = vector.extract_strided_slice %2 {offsets = [16, 0], sizes = [16, 8], strides = [1, 1]} : vector<144x8xf32> to vector<16x8xf32>
    %c0_10 = arith.constant 0 : index
    %c1 = arith.constant 1 : index
    %c0_11 = arith.constant 0 : index
    %c0_12 = arith.constant 0 : index
    %11 = vector.load %arg2[%c0_10, %c1, %c0_11, %c0_12] : memref<3x3x8x64xf32, #tpu.memory_space<vmem>>, vector<1x1x8x64xf32>
    %12 = vector.shape_cast %11 : vector<1x1x8x64xf32> to vector<8x64xf32>
    %cst_13 = arith.constant dense<0.000000e+00> : vector<16x64xf32>
    %13 = tpu.matmul %10, %12, %cst_13 {dimension_numbers = #tpu.dot_dimension_numbers<[1], [0], [0], [1], [0, 0, 1, 1], [], []>} : vector<16x8xf32>, vector<8x64xf32>, vector<16x64xf32> -> vector<16x64xf32>
    %14 = arith.addf %9, %13 : vector<16x64xf32>
    %15 = vector.extract_strided_slice %2 {offsets = [32, 0], sizes = [16, 8], strides = [1, 1]} : vector<144x8xf32> to vector<16x8xf32>
    %c0_14 = arith.constant 0 : index
    %c2 = arith.constant 2 : index
    %c0_15 = arith.constant 0 : index
    %c0_16 = arith.constant 0 : index
    %16 = vector.load %arg2[%c0_14, %c2, %c0_15, %c0_16] : memref<3x3x8x64xf32, #tpu.memory_space<vmem>>, vector<1x1x8x64xf32>
    %17 = vector.shape_cast %16 : vector<1x1x8x64xf32> to vector<8x64xf32>
    %cst_17 = arith.constant dense<0.000000e+00> : vector<16x64xf32>
    %18 = tpu.matmul %15, %17, %cst_17 {dimension_numbers = #tpu.dot_dimension_numbers<[1], [0], [0], [1], [0, 0, 1, 1], [], []>} : vector<16x8xf32>, vector<8x64xf32>, vector<16x64xf32> -> vector<16x64xf32>
    %19 = arith.addf %14, %18 : vector<16x64xf32>
    %c0_18 = arith.constant 0 : index
    %c0_19 = arith.constant 0 : index
    %c0_20 = arith.constant 0 : index
    %20 = vector.load %arg3[%c0_18, %c0_19, %c0_20] : memref<3x1x64xf32, #tpu.memory_space<vmem>>, vector<1x1x64xf32>
    %21 = vector.shape_cast %20 : vector<1x1x64xf32> to vector<1x64xf32>
    %22 = vector.broadcast %21 : vector<1x64xf32> to vector<16x64xf32>
    %23 = arith.addf %19, %22 : vector<16x64xf32>
    %cst_21 = arith.constant 0.000000e+00 : f32
    %24 = vector.broadcast %cst_21 : f32 to vector<16x64xf32>
    %25 = arith.maximumf %23, %24 : vector<16x64xf32>
    %26 = arith.addf %3, %25 : vector<16x64xf32>
    %cst_22 = arith.constant 0.000000e+00 : f32
    %27 = vector.broadcast %cst_22 : f32 to vector<16x64xf32>
    %28 = vector.extract_strided_slice %2 {offsets = [48, 0], sizes = [16, 8], strides = [1, 1]} : vector<144x8xf32> to vector<16x8xf32>
    %c1_23 = arith.constant 1 : index
    %c0_24 = arith.constant 0 : index
    %c0_25 = arith.constant 0 : index
    %c0_26 = arith.constant 0 : index
    %29 = vector.load %arg2[%c1_23, %c0_24, %c0_25, %c0_26] : memref<3x3x8x64xf32, #tpu.memory_space<vmem>>, vector<1x1x8x64xf32>
    %30 = vector.shape_cast %29 : vector<1x1x8x64xf32> to vector<8x64xf32>
    %cst_27 = arith.constant dense<0.000000e+00> : vector<16x64xf32>
    %31 = tpu.matmul %28, %30, %cst_27 {dimension_numbers = #tpu.dot_dimension_numbers<[1], [0], [0], [1], [0, 0, 1, 1], [], []>} : vector<16x8xf32>, vector<8x64xf32>, vector<16x64xf32> -> vector<16x64xf32>
    %32 = arith.addf %27, %31 : vector<16x64xf32>
    %33 = vector.extract_strided_slice %2 {offsets = [64, 0], sizes = [16, 8], strides = [1, 1]} : vector<144x8xf32> to vector<16x8xf32>
    %c1_28 = arith.constant 1 : index
    %c1_29 = arith.constant 1 : index
    %c0_30 = arith.constant 0 : index
    %c0_31 = arith.constant 0 : index
    %34 = vector.load %arg2[%c1_28, %c1_29, %c0_30, %c0_31] : memref<3x3x8x64xf32, #tpu.memory_space<vmem>>, vector<1x1x8x64xf32>
    %35 = vector.shape_cast %34 : vector<1x1x8x64xf32> to vector<8x64xf32>
    %cst_32 = arith.constant dense<0.000000e+00> : vector<16x64xf32>
    %36 = tpu.matmul %33, %35, %cst_32 {dimension_numbers = #tpu.dot_dimension_numbers<[1], [0], [0], [1], [0, 0, 1, 1], [], []>} : vector<16x8xf32>, vector<8x64xf32>, vector<16x64xf32> -> vector<16x64xf32>
    %37 = arith.addf %32, %36 : vector<16x64xf32>
    %38 = vector.extract_strided_slice %2 {offsets = [80, 0], sizes = [16, 8], strides = [1, 1]} : vector<144x8xf32> to vector<16x8xf32>
    %c1_33 = arith.constant 1 : index
    %c2_34 = arith.constant 2 : index
    %c0_35 = arith.constant 0 : index
    %c0_36 = arith.constant 0 : index
    %39 = vector.load %arg2[%c1_33, %c2_34, %c0_35, %c0_36] : memref<3x3x8x64xf32, #tpu.memory_space<vmem>>, vector<1x1x8x64xf32>
    %40 = vector.shape_cast %39 : vector<1x1x8x64xf32> to vector<8x64xf32>
    %cst_37 = arith.constant dense<0.000000e+00> : vector<16x64xf32>
    %41 = tpu.matmul %38, %40, %cst_37 {dimension_numbers = #tpu.dot_dimension_numbers<[1], [0], [0], [1], [0, 0, 1, 1], [], []>} : vector<16x8xf32>, vector<8x64xf32>, vector<16x64xf32> -> vector<16x64xf32>
    %42 = arith.addf %37, %41 : vector<16x64xf32>
    %c1_38 = arith.constant 1 : index
    %c0_39 = arith.constant 0 : index
    %c0_40 = arith.constant 0 : index
    %43 = vector.load %arg3[%c1_38, %c0_39, %c0_40] : memref<3x1x64xf32, #tpu.memory_space<vmem>>, vector<1x1x64xf32>
    %44 = vector.shape_cast %43 : vector<1x1x64xf32> to vector<1x64xf32>
    %45 = vector.broadcast %44 : vector<1x64xf32> to vector<16x64xf32>
    %46 = arith.addf %42, %45 : vector<16x64xf32>
    %cst_41 = arith.constant 0.000000e+00 : f32
    %47 = vector.broadcast %cst_41 : f32 to vector<16x64xf32>
    %48 = arith.maximumf %46, %47 : vector<16x64xf32>
    %49 = arith.addf %26, %48 : vector<16x64xf32>
    %cst_42 = arith.constant 0.000000e+00 : f32
    %50 = vector.broadcast %cst_42 : f32 to vector<16x64xf32>
    %51 = vector.extract_strided_slice %2 {offsets = [96, 0], sizes = [16, 8], strides = [1, 1]} : vector<144x8xf32> to vector<16x8xf32>
    %c2_43 = arith.constant 2 : index
    %c0_44 = arith.constant 0 : index
    %c0_45 = arith.constant 0 : index
    %c0_46 = arith.constant 0 : index
    %52 = vector.load %arg2[%c2_43, %c0_44, %c0_45, %c0_46] : memref<3x3x8x64xf32, #tpu.memory_space<vmem>>, vector<1x1x8x64xf32>
    %53 = vector.shape_cast %52 : vector<1x1x8x64xf32> to vector<8x64xf32>
    %cst_47 = arith.constant dense<0.000000e+00> : vector<16x64xf32>
    %54 = tpu.matmul %51, %53, %cst_47 {dimension_numbers = #tpu.dot_dimension_numbers<[1], [0], [0], [1], [0, 0, 1, 1], [], []>} : vector<16x8xf32>, vector<8x64xf32>, vector<16x64xf32> -> vector<16x64xf32>
    %55 = arith.addf %50, %54 : vector<16x64xf32>
    %56 = vector.extract_strided_slice %2 {offsets = [112, 0], sizes = [16, 8], strides = [1, 1]} : vector<144x8xf32> to vector<16x8xf32>
    %c2_48 = arith.constant 2 : index
    %c1_49 = arith.constant 1 : index
    %c0_50 = arith.constant 0 : index
    %c0_51 = arith.constant 0 : index
    %57 = vector.load %arg2[%c2_48, %c1_49, %c0_50, %c0_51] : memref<3x3x8x64xf32, #tpu.memory_space<vmem>>, vector<1x1x8x64xf32>
    %58 = vector.shape_cast %57 : vector<1x1x8x64xf32> to vector<8x64xf32>
    %cst_52 = arith.constant dense<0.000000e+00> : vector<16x64xf32>
    %59 = tpu.matmul %56, %58, %cst_52 {dimension_numbers = #tpu.dot_dimension_numbers<[1], [0], [0], [1], [0, 0, 1, 1], [], []>} : vector<16x8xf32>, vector<8x64xf32>, vector<16x64xf32> -> vector<16x64xf32>
    %60 = arith.addf %55, %59 : vector<16x64xf32>
    %61 = vector.extract_strided_slice %2 {offsets = [128, 0], sizes = [16, 8], strides = [1, 1]} : vector<144x8xf32> to vector<16x8xf32>
    %c2_53 = arith.constant 2 : index
    %c2_54 = arith.constant 2 : index
    %c0_55 = arith.constant 0 : index
    %c0_56 = arith.constant 0 : index
    %62 = vector.load %arg2[%c2_53, %c2_54, %c0_55, %c0_56] : memref<3x3x8x64xf32, #tpu.memory_space<vmem>>, vector<1x1x8x64xf32>
    %63 = vector.shape_cast %62 : vector<1x1x8x64xf32> to vector<8x64xf32>
    %cst_57 = arith.constant dense<0.000000e+00> : vector<16x64xf32>
    %64 = tpu.matmul %61, %63, %cst_57 {dimension_numbers = #tpu.dot_dimension_numbers<[1], [0], [0], [1], [0, 0, 1, 1], [], []>} : vector<16x8xf32>, vector<8x64xf32>, vector<16x64xf32> -> vector<16x64xf32>
    %65 = arith.addf %60, %64 : vector<16x64xf32>
    %c2_58 = arith.constant 2 : index
    %c0_59 = arith.constant 0 : index
    %c0_60 = arith.constant 0 : index
    %66 = vector.load %arg3[%c2_58, %c0_59, %c0_60] : memref<3x1x64xf32, #tpu.memory_space<vmem>>, vector<1x1x64xf32>
    %67 = vector.shape_cast %66 : vector<1x1x64xf32> to vector<1x64xf32>
    %68 = vector.broadcast %67 : vector<1x64xf32> to vector<16x64xf32>
    %69 = arith.addf %65, %68 : vector<16x64xf32>
    %cst_61 = arith.constant 0.000000e+00 : f32
    %70 = vector.broadcast %cst_61 : f32 to vector<16x64xf32>
    %71 = arith.maximumf %69, %70 : vector<16x64xf32>
    %72 = arith.addf %49, %71 : vector<16x64xf32>
    %c0_62 = arith.constant 0 : index
    %c0_63 = arith.constant 0 : index
    %73 = vector.load %arg5[%c0_62, %c0_63] : memref<16x64xf32, #tpu.memory_space<vmem>>, vector<16x64xf32>
    tpu.vector_store %arg5[%c0_62, %c0_63], %72 {strides = array<i32>} : memref<16x64xf32, #tpu.memory_space<vmem>>, vector<16x64xf32>,
    return
  }
  func.func @transform_0(%arg0: i32) -> (i32, i32) {
    %c0_i32 = arith.constant 0 : i32
    %c0_i32_0 = arith.constant 0 : i32
    %c0_i32_1 = arith.constant 0 : i32
    return %c0_i32, %c0_i32_0 : i32, i32
  }
  func.func @transform_1(%arg0: i32) -> (i32, i32, i32, i32) {
    %c0_i32 = arith.constant 0 : i32
    %c0_i32_0 = arith.constant 0 : i32
    %c0_i32_1 = arith.constant 0 : i32
    %c0_i32_2 = arith.constant 0 : i32
    %c0_i32_3 = arith.constant 0 : i32
    return %c0_i32, %c0_i32_0, %c0_i32_1, %c0_i32_2 : i32, i32, i32, i32
  }
  func.func @transform_2(%arg0: i32) -> (i32, i32, i32) {
    %c0_i32 = arith.constant 0 : i32
    %c0_i32_0 = arith.constant 0 : i32
    %c0_i32_1 = arith.constant 0 : i32
    %c0_i32_2 = arith.constant 0 : i32
    return %c0_i32, %c0_i32_0, %c0_i32_1 : i32, i32, i32
  }
  func.func @transform_3(%arg0: i32) -> (i32, i32) {
    %c0_i32 = arith.constant 0 : i32
    %c0_i32_0 = arith.constant 0 : i32
    return %c0_i32, %arg0 : i32, i32
  }
  func.func @transform_4(%arg0: i32) -> (i32, i32) {
    %c0_i32 = arith.constant 0 : i32
    %c0_i32_0 = arith.constant 0 : i32
    return %c0_i32, %arg0 : i32, i32
  }
}

</mosaic_0001>

<llo_original>
// kernel: tpu_custom_call.1
$region0: #{tpu_custom_call.1}
  #allocation0 [shape = 'u32[]', space=smem, size = 0x4, offset = 0x4, fixed_abs, tag = 'smem constant byte address 0x4 - core index']
  #allocation1 [shape = 'u32[144,128]{1,0:T(1,128)}', space=vmem, size = 0x12000, scoped, tag = 'internal scratch']
  %s0 = inlined_call_operand.vmem [shape: f32[144,16], index: 0, kind: input, shape index: {}]
  %s1 = inlined_call_operand.vmem [shape: f32[3,3,8,64], index: 1, kind: input, shape index: {}]
  %s2 = inlined_call_operand.vmem [shape: f32[3,1,64], index: 2, kind: input, shape index: {}]
  %s3 = inlined_call_operand.vmem [shape: f32[16,8], index: 3, kind: input, shape index: {}]
  %s4 = inlined_call_operand.hbm [shape: f32[16,64], index: 4, kind: output, shape index: {}]
  %s5 = sld [smem:[#allocation0]]
  $region26: #{tpu_custom_call.1} parent=0
    _
  %s7 = ssub.s32 1, %s5
  %s8 = scalar_select 0, %s7, %s5
  $region1: #{tpu_custom_call.1} parent=0
    #allocation2 [shape = 'u8[8192]{0}', space=vmem, size = 0x2000, scoped, tag = 'output window, operand 0, single buffered']
    #allocation3 [shape = 's32[1]{0}', space=sflag, size = 0x4, scoped, tag = 'scoped memory for tpu_custom_call.1']
    %9 = vsyncpa [#allocation3], 0
    // Predicated region
    $region2: #{tpu_custom_call.1} parent=1 // pred_check
      _
    $region3: #{tpu_custom_call.1} parent=1 // pred_check_branch
      %11 = sbr.rel (0) target = $region5
    $region4: #{tpu_custom_call.1} parent=1 // pred_region
      _
    $region5: #{tpu_custom_call.1} parent=1 // pred_fallthru
      _
    // Predicated region
    $region6: #{tpu_custom_call.1} parent=1 // pred_check
      _
    $region7: #{tpu_custom_call.1} parent=1 // pred_check_branch
      %13 = sbr.rel (0) target = $region9
    $region8: #{tpu_custom_call.1} parent=1 // pred_region
      _
    $region9: #{tpu_custom_call.1} parent=1 // pred_fallthru
      _
    // Predicated region
    $region10: #{tpu_custom_call.1} parent=1 // pred_check
      _
    $region11: #{tpu_custom_call.1} parent=1 // pred_check_branch
      %15 = sbr.rel (0) target = $region13
    $region12: #{tpu_custom_call.1} parent=1 // pred_region
      _
    $region13: #{tpu_custom_call.1} parent=1 // pred_fallthru
      _
    // Predicated region
    $region14: #{tpu_custom_call.1} parent=1 // pred_check
      _
    $region15: #{tpu_custom_call.1} parent=1 // pred_check_branch
      %17 = sbr.rel (0) target = $region17
    $region16: #{tpu_custom_call.1} parent=1 // pred_region
      _
    $region17: #{tpu_custom_call.1} parent=1 // pred_fallthru
      _
    %v18 = vld [vmem:[%s3] sm:$0xff]
    %v19 = vld [vmem:[%s3 + $0x8] sm:$0xff]
    %v20 = vld [vmem:[%s0] sm:$0xff]
    %v21 = vld [vmem:[%s0 + $0x8] sm:$0xff]
    %v22 = vld [vmem:[%s0 + $0x10] sm:$0xff]
    %v23 = vld [vmem:[%s0 + $0x18] sm:$0xff]
    %v24 = vld [vmem:[%s0 + $0x20] sm:$0xff]
    %v25 = vld [vmem:[%s0 + $0x28] sm:$0xff]
    %v26 = vld [vmem:[%s0 + $0x30] sm:$0xff]
    %v27 = vld [vmem:[%s0 + $0x38] sm:$0xff]
    %v28 = vld [vmem:[%s0 + $0x40] sm:$0xff]
    %v29 = vld [vmem:[%s0 + $0x48] sm:$0xff]
    %v30 = vld [vmem:[%s0 + $0x50] sm:$0xff]
    %v31 = vld [vmem:[%s0 + $0x58] sm:$0xff]
    %v32 = vld [vmem:[%s0 + $0x60] sm:$0xff]
    %v33 = vld [vmem:[%s0 + $0x68] sm:$0xff]
    %v34 = vld [vmem:[%s0 + $0x70] sm:$0xff]
    %v35 = vld [vmem:[%s0 + $0x78] sm:$0xff]
    %v36 = vld [vmem:[%s0 + $0x80] sm:$0xff]
    %v37 = vld [vmem:[%s0 + $0x88] sm:$0xff]
    %vm38 = vcmask 130048
    %v40 = vsel %vm38, %v20, 0
    %v43 = vsel %vm38, %v21, 0
    %v46 = vsel %vm38, %v22, 0
    %v49 = vsel %vm38, %v23, 0
    %v52 = vsel %vm38, %v24, 0
    %v55 = vsel %vm38, %v25, 0
    %v58 = vsel %vm38, %v26, 0
    %v61 = vsel %vm38, %v27, 0
    %v64 = vsel %vm38, %v28, 0
    %v67 = vsel %vm38, %v29, 0
    %v70 = vsel %vm38, %v30, 0
    %v73 = vsel %vm38, %v31, 0
    %v76 = vsel %vm38, %v32, 0
    %v79 = vsel %vm38, %v33, 0
    %v82 = vsel %vm38, %v34, 0
    %v85 = vsel %vm38, %v35, 0
    %v88 = vsel %vm38, %v36, 0
    %v91 = vsel %vm38, %v37, 0
    %93 = vmatprep.subr.mxu0 0.0
    %94 = vmatpush1.msra.mxu0 0.0
    %95 = vmatprep.subr.mxu0 0.0
    %96 = vmatpush1.msra.mxu0 0.0
    %97 = vmatprep.subr.mxu0 0.0
    %98 = vmatpush1.msra.mxu0 0.0
    %99 = vmatprep.subr.mxu0 0.0
    %100 = vmatpush1.msra.mxu0 0.0
    %101 = vmatprep.subr.mxu0 0.0
    %102 = vmatpush1.msra.mxu0 0.0
    %103 = vmatprep.subr.mxu0 0.0
    %104 = vmatpush1.msra.mxu0 0.0
    %105 = vmatprep.subr.mxu0 0.0
    %106 = vmatpush1.msra.mxu0 0.0
    %107 = vmatprep.subr.mxu0 0.0
    %108 = vmatpush1.msra.mxu0 0.0
    %109 = vmatprep.subr.mxu0 0.0
    %110 = vmatpush1.msra.mxu0 0.0
    %111 = vmatprep.subr.mxu0 0.0
    %112 = vmatpush1.msra.mxu0 0.0
    %113 = vmatprep.subr.mxu0 0.0
    %114 = vmatpush1.msra.mxu0 0.0
    %115 = vmatprep.subr.mxu0 0.0
    %116 = vmatpush1.msra.mxu0 0.0
    %117 = vmatprep.subr.mxu0 0.0
    %118 = vmatpush1.msra.mxu0 0.0
    %119 = vmatprep.subr.mxu0 0.0
    %120 = vmatpush1.msra.mxu0 0.0
    %121 = vmatprep.subr.mxu0 0.0
    %122 = vmatpush1.msra.mxu0 %v19
    %123 = vmatprep.subr.mxu0 0.0
    %124 = vmatpush1.msra.mxu0 %v18
    %125 = vmatprep.subr.mxu0 0.0
    %126 = vmatpush2.msra.mxu0 0.0
    %127 = vmatprep.subr.mxu0 0.0
    %128 = vmatpush2.msra.mxu0 0.0
    %129 = vmatprep.subr.mxu0 0.0
    %130 = vmatpush2.msra.mxu0 0.0
    %131 = vmatprep.subr.mxu0 0.0
    %132 = vmatpush2.msra.mxu0 0.0
    %133 = vmatprep.subr.mxu0 0.0
    %134 = vmatpush2.msra.mxu0 0.0
    %135 = vmatprep.subr.mxu0 0.0
    %136 = vmatpush2.msra.mxu0 0.0
    %137 = vmatprep.subr.mxu0 0.0
    %138 = vmatpush2.msra.mxu0 0.0
    %139 = vmatprep.subr.mxu0 0.0
    %140 = vmatpush2.msra.mxu0 0.0
    %141 = vmatprep.subr.mxu0 0.0
    %142 = vmatpush2.msra.mxu0 0.0
    %143 = vmatprep.subr.mxu0 0.0
    %144 = vmatpush2.msra.mxu0 0.0
    %145 = vmatprep.subr.mxu0 0.0
    %146 = vmatpush2.msra.mxu0 0.0
    %147 = vmatprep.subr.mxu0 0.0
    %148 = vmatpush2.msra.mxu0 0.0
    %149 = vmatprep.subr.mxu0 0.0
    %150 = vmatpush2.msra.mxu0 0.0
    %151 = vmatprep.subr.mxu0 0.0
    %152 = vmatpush2.msra.mxu0 0.0
    %153 = vmatprep.subr.mxu0 0.0
    %154 = vmatpush2.msra.mxu0 0.0
    %155 = vmatprep.subr.mxu0 0.0
    %156 = vmatpush2.msra.mxu0 0.0
    %157 = vmatprep.mubr.f32.mxu0 0.0
    %158 = vmatmul.mubr.f32.gmra.mxu0 %v40
    %v159 = vpop.f32.mrf.mxu0
    %v160 = vadd.f32 0.0, %v159
    %v161 = vpop.f32.mrf.mxu0
    %162 = vmatprep.mubr.f32.mxu0 0.0
    %163 = vmatmul.mubr.f32.gmra.mxu0 %v43
    %v164 = vpop.f32.mrf.mxu0
    %v165 = vadd.f32 0.0, %v164
    %v166 = vpop.f32.mrf.mxu0
    %167 = vmatprep.mubr.f32.mxu0 0.0
    %168 = vmatmul.mubr.f32.gmra.mxu0 %v46
    %v169 = vpop.f32.mrf.mxu0
    %v170 = vadd.f32 0.0, %v169
    %v171 = vpop.f32.mrf.mxu0
    %172 = vmatprep.mubr.f32.mxu0 0.0
    %173 = vmatmul.mubr.f32.gmra.mxu0 %v49
    %v174 = vpop.f32.mrf.mxu0
    %v175 = vadd.f32 0.0, %v174
    %v176 = vpop.f32.mrf.mxu0
    %177 = vmatprep.mubr.f32.mxu0 0.0
    %178 = vmatmul.mubr.f32.gmra.mxu0 %v52
    %v179 = vpop.f32.mrf.mxu0
    %v180 = vadd.f32 0.0, %v179
    %v181 = vpop.f32.mrf.mxu0
    %182 = vmatprep.mubr.f32.mxu0 0.0
    %183 = vmatmul.mubr.f32.gmra.mxu0 %v55
    %v184 = vpop.f32.mrf.mxu0
    %v185 = vadd.f32 0.0, %v184
    %v186 = vpop.f32.mrf.mxu0
    %187 = vmatprep.mubr.f32.mxu0 0.0
    %188 = vmatmul.mubr.f32.gmra.mxu0 %v58
    %v189 = vpop.f32.mrf.mxu0
    %v190 = vadd.f32 0.0, %v189
    %v191 = vpop.f32.mrf.mxu0
    %192 = vmatprep.mubr.f32.mxu0 0.0
    %193 = vmatmul.mubr.f32.gmra.mxu0 %v61
    %v194 = vpop.f32.mrf.mxu0
    %v195 = vadd.f32 0.0, %v194
    %v196 = vpop.f32.mrf.mxu0
    %197 = vmatprep.mubr.f32.mxu0 0.0
    %198 = vmatmul.mubr.f32.gmra.mxu0 %v64
    %v199 = vpop.f32.mrf.mxu0
    %v200 = vadd.f32 0.0, %v199
    %v201 = vpop.f32.mrf.mxu0
    %202 = vmatprep.mubr.f32.mxu0 0.0
    %203 = vmatmul.mubr.f32.gmra.mxu0 %v67
    %v204 = vpop.f32.mrf.mxu0
    %v205 = vadd.f32 0.0, %v204
    %v206 = vpop.f32.mrf.mxu0
    %207 = vmatprep.mubr.f32.mxu0 0.0
    %208 = vmatmul.mubr.f32.gmra.mxu0 %v70
    %v209 = vpop.f32.mrf.mxu0
    %v210 = vadd.f32 0.0, %v209
    %v211 = vpop.f32.mrf.mxu0
    %212 = vmatprep.mubr.f32.mxu0 0.0
    %213 = vmatmul.mubr.f32.gmra.mxu0 %v73
    %v214 = vpop.f32.mrf.mxu0
    %v215 = vadd.f32 0.0, %v214
    %v216 = vpop.f32.mrf.mxu0
    %217 = vmatprep.mubr.f32.mxu0 0.0
    %218 = vmatmul.mubr.f32.gmra.mxu0 %v76
    %v219 = vpop.f32.mrf.mxu0
    %v220 = vadd.f32 0.0, %v219
    %v221 = vpop.f32.mrf.mxu0
    %222 = vmatprep.mubr.f32.mxu0 0.0
    %223 = vmatmul.mubr.f32.gmra.mxu0 %v79
    %v224 = vpop.f32.mrf.mxu0
    %v225 = vadd.f32 0.0, %v224
    %v226 = vpop.f32.mrf.mxu0
    %227 = vmatprep.mubr.f32.mxu0 0.0
    %228 = vmatmul.mubr.f32.gmra.mxu0 %v82
    %v229 = vpop.f32.mrf.mxu0
    %v230 = vadd.f32 0.0, %v229
    %v231 = vpop.f32.mrf.mxu0
    %232 = vmatprep.mubr.f32.mxu0 0.0
    %233 = vmatmul.mubr.f32.gmra.mxu0 %v85
    %v234 = vpop.f32.mrf.mxu0
    %v235 = vadd.f32 0.0, %v234
    %v236 = vpop.f32.mrf.mxu0
    %237 = vmatprep.mubr.f32.mxu0 0.0
    %238 = vmatmul.mubr.f32.gmra.mxu0 %v88
    %v239 = vpop.f32.mrf.mxu0
    %v240 = vadd.f32 0.0, %v239
    %v241 = vpop.f32.mrf.mxu0
    %242 = vmatprep.mubr.f32.mxu0 0.0
    %243 = vmatmul.mubr.f32.gmra.mxu0 %v91
    %v244 = vpop.f32.mrf.mxu0
    %v245 = vadd.f32 0.0, %v244
    %v246 = vpop.f32.mrf.mxu0
    %247 = vdwg.mxu0
    %v248 = vld [vmem:[%s1] sm:$0xff]
    %s249 = scalar_lea.vmem %s1, 8
    %v250 = vld [vmem:[%s249] sm:$0xff]
    %vm251 = vcmask 64512
    %v253 = vsel %vm251, %v170, 0
    %v256 = vsel %vm251, %v175, 0
    %258 = vmatprep.subr.mxu0 0.0
    %259 = vmatpush1.msra.mxu0 0.0
    %260 = vmatprep.subr.mxu0 0.0
    %261 = vmatpush1.msra.mxu0 0.0
    %262 = vmatprep.subr.mxu0 0.0
    %263 = vmatpush1.msra.mxu0 0.0
    %264 = vmatprep.subr.mxu0 0.0
    %265 = vmatpush1.msra.mxu0 0.0
    %266 = vmatprep.subr.mxu0 0.0
    %267 = vmatpush1.msra.mxu0 0.0
    %268 = vmatprep.subr.mxu0 0.0
    %269 = vmatpush1.msra.mxu0 0.0
    %270 = vmatprep.subr.mxu0 0.0
    %271 = vmatpush1.msra.mxu0 0.0
    %272 = vmatprep.subr.mxu0 0.0
    %273 = vmatpush1.msra.mxu0 0.0
    %274 = vmatprep.subr.mxu0 0.0
    %275 = vmatpush1.msra.mxu0 0.0
    %276 = vmatprep.subr.mxu0 0.0
    %277 = vmatpush1.msra.mxu0 0.0
    %278 = vmatprep.subr.mxu0 0.0
    %279 = vmatpush1.msra.mxu0 0.0
    %280 = vmatprep.subr.mxu0 0.0
    %281 = vmatpush1.msra.mxu0 0.0
    %282 = vmatprep.subr.mxu0 0.0
    %283 = vmatpush1.msra.mxu0 0.0
    %284 = vmatprep.subr.mxu0 0.0
    %285 = vmatpush1.msra.mxu0 0.0
    %286 = vmatprep.subr.mxu0 0.0
    %287 = vmatpush1.msra.mxu0 0.0
    %288 = vmatprep.subr.mxu0 0.0
    %289 = vmatpush1.msra.mxu0 %v250
    %290 = vmatprep.subr.mxu0 0.0
    %291 = vmatpush2.msra.mxu0 0.0
    %292 = vmatprep.subr.mxu0 0.0
    %293 = vmatpush2.msra.mxu0 0.0
    %294 = vmatprep.subr.mxu0 0.0
    %295 = vmatpush2.msra.mxu0 0.0
    %296 = vmatprep.subr.mxu0 0.0
    %297 = vmatpush2.msra.mxu0 0.0
    %298 = vmatprep.subr.mxu0 0.0
    %299 = vmatpush2.msra.mxu0 0.0
    %300 = vmatprep.subr.mxu0 0.0
    %301 = vmatpush2.msra.mxu0 0.0
    %302 = vmatprep.subr.mxu0 0.0
    %303 = vmatpush2.msra.mxu0 0.0
    %304 = vmatprep.subr.mxu0 0.0
    %305 = vmatpush2.msra.mxu0 0.0
    %306 = vmatprep.subr.mxu0 0.0
    %307 = vmatpush2.msra.mxu0 0.0
    %308 = vmatprep.subr.mxu0 0.0
    %309 = vmatpush2.msra.mxu0 0.0
    %310 = vmatprep.subr.mxu0 0.0
    %311 = vmatpush2.msra.mxu0 0.0
    %312 = vmatprep.subr.mxu0 0.0
    %313 = vmatpush2.msra.mxu0 0.0
    %314 = vmatprep.subr.mxu0 0.0
    %315 = vmatpush2.msra.mxu0 0.0
    %316 = vmatprep.subr.mxu0 0.0
    %317 = vmatpush2.msra.mxu0 0.0
    %318 = vmatprep.subr.mxu0 0.0
    %319 = vmatpush2.msra.mxu0 0.0
    %320 = vmatprep.subr.mxu0 0.0
    %321 = vmatpush2.msra.mxu0 0.0
    %322 = vmatprep.mubr.f32.mxu0 0.0
    %323 = vmatmul.mubr.f32.gmra.mxu0 %v253
    %v324 = vpop.f32.mrf.mxu0
    %v325 = vadd.f32 0.0, %v324
    %v326 = vpop.f32.mrf.mxu0
    %327 = vmatprep.mubr.f32.mxu0 0.0
    %328 = vmatmul.mubr.f32.gmra.mxu0 %v256
    %v329 = vpop.f32.mrf.mxu0
    %v330 = vadd.f32 0.0, %v329
    %v331 = vpop.f32.mrf.mxu0
    %332 = vdwg.mxu0
    %v334 = vsel %vm251, %v160, 0
    %v337 = vsel %vm251, %v165, 0
    %339 = vmatprep.subr.mxu0 0.0
    %340 = vmatpush1.msra.mxu0 0.0
    %341 = vmatprep.subr.mxu0 0.0
    %342 = vmatpush1.msra.mxu0 0.0
    %343 = vmatprep.subr.mxu0 0.0
    %344 = vmatpush1.msra.mxu0 0.0
    %345 = vmatprep.subr.mxu0 0.0
    %346 = vmatpush1.msra.mxu0 0.0
    %347 = vmatprep.subr.mxu0 0.0
    %348 = vmatpush1.msra.mxu0 0.0
    %349 = vmatprep.subr.mxu0 0.0
    %350 = vmatpush1.msra.mxu0 0.0
    %351 = vmatprep.subr.mxu0 0.0
    %352 = vmatpush1.msra.mxu0 0.0
    %353 = vmatprep.subr.mxu0 0.0
    %354 = vmatpush1.msra.mxu0 0.0
    %355 = vmatprep.subr.mxu0 0.0
    %356 = vmatpush1.msra.mxu0 0.0
    %357 = vmatprep.subr.mxu0 0.0
    %358 = vmatpush1.msra.mxu0 0.0
    %359 = vmatprep.subr.mxu0 0.0
    %360 = vmatpush1.msra.mxu0 0.0
    %361 = vmatprep.subr.mxu0 0.0
    %362 = vmatpush1.msra.mxu0 0.0
    %363 = vmatprep.subr.mxu0 0.0
    %364 = vmatpush1.msra.mxu0 0.0
    %365 = vmatprep.subr.mxu0 0.0
    %366 = vmatpush1.msra.mxu0 0.0
    %367 = vmatprep.subr.mxu0 0.0
    %368 = vmatpush1.msra.mxu0 0.0
    %369 = vmatprep.subr.mxu0 0.0
    %370 = vmatpush1.msra.mxu0 %v248
    %371 = vmatprep.subr.mxu0 0.0
    %372 = vmatpush2.msra.mxu0 0.0
    %373 = vmatprep.subr.mxu0 0.0
    %374 = vmatpush2.msra.mxu0 0.0
    %375 = vmatprep.subr.mxu0 0.0
    %376 = vmatpush2.msra.mxu0 0.0
    %377 = vmatprep.subr.mxu0 0.0
    %378 = vmatpush2.msra.mxu0 0.0
    %379 = vmatprep.subr.mxu0 0.0
    %380 = vmatpush2.msra.mxu0 0.0
    %381 = vmatprep.subr.mxu0 0.0
    %382 = vmatpush2.msra.mxu0 0.0
    %383 = vmatprep.subr.mxu0 0.0
    %384 = vmatpush2.msra.mxu0 0.0
    %385 = vmatprep.subr.mxu0 0.0
    %386 = vmatpush2.msra.mxu0 0.0
    %387 = vmatprep.subr.mxu0 0.0
    %388 = vmatpush2.msra.mxu0 0.0
    %389 = vmatprep.subr.mxu0 0.0
    %390 = vmatpush2.msra.mxu0 0.0
    %391 = vmatprep.subr.mxu0 0.0
    %392 = vmatpush2.msra.mxu0 0.0
    %393 = vmatprep.subr.mxu0 0.0
    %394 = vmatpush2.msra.mxu0 0.0
    %395 = vmatprep.subr.mxu0 0.0
    %396 = vmatpush2.msra.mxu0 0.0
    %397 = vmatprep.subr.mxu0 0.0
    %398 = vmatpush2.msra.mxu0 0.0
    %399 = vmatprep.subr.mxu0 0.0
    %400 = vmatpush2.msra.mxu0 0.0
    %401 = vmatprep.subr.mxu0 0.0
    %402 = vmatpush2.msra.mxu0 0.0
    %403 = vmatprep.mubr.f32.mxu0 0.0
    %404 = vmatmul.mubr.f32.gmra.mxu0 %v334
    %v405 = vpop.f32.mrf.mxu0
    %v406 = vadd.f32 %v325, %v405
    %v407 = vpop.f32.mrf.mxu0
    %408 = vmatprep.mubr.f32.mxu0 0.0
    %409 = vmatmul.mubr.f32.gmra.mxu0 %v337
    %v410 = vpop.f32.mrf.mxu0
    %v411 = vadd.f32 %v330, %v410
    %v412 = vpop.f32.mrf.mxu0
    %413 = vdwg.mxu0
    %s414 = scalar_lea.vmem %s1, 16
    %v415 = vld [vmem:[%s414] sm:$0xff]
    %v417 = vsel %vm251, %v180, 0
    %v420 = vsel %vm251, %v185, 0
    %422 = vmatprep.subr.mxu0 0.0
    %423 = vmatpush1.msra.mxu0 0.0
    %424 = vmatprep.subr.mxu0 0.0
    %425 = vmatpush1.msra.mxu0 0.0
    %426 = vmatprep.subr.mxu0 0.0
    %427 = vmatpush1.msra.mxu0 0.0
    %428 = vmatprep.subr.mxu0 0.0
    %429 = vmatpush1.msra.mxu0 0.0
    %430 = vmatprep.subr.mxu0 0.0
    %431 = vmatpush1.msra.mxu0 0.0
    %432 = vmatprep.subr.mxu0 0.0
    %433 = vmatpush1.msra.mxu0 0.0
    %434 = vmatprep.subr.mxu0 0.0
    %435 = vmatpush1.msra.mxu0 0.0
    %436 = vmatprep.subr.mxu0 0.0
    %437 = vmatpush1.msra.mxu0 0.0
    %438 = vmatprep.subr.mxu0 0.0
    %439 = vmatpush1.msra.mxu0 0.0
    %440 = vmatprep.subr.mxu0 0.0
    %441 = vmatpush1.msra.mxu0 0.0
    %442 = vmatprep.subr.mxu0 0.0
    %443 = vmatpush1.msra.mxu0 0.0
    %444 = vmatprep.subr.mxu0 0.0
    %445 = vmatpush1.msra.mxu0 0.0
    %446 = vmatprep.subr.mxu0 0.0
    %447 = vmatpush1.msra.mxu0 0.0
    %448 = vmatprep.subr.mxu0 0.0
    %449 = vmatpush1.msra.mxu0 0.0
    %450 = vmatprep.subr.mxu0 0.0
    %451 = vmatpush1.msra.mxu0 0.0
    %452 = vmatprep.subr.mxu0 0.0
    %453 = vmatpush1.msra.mxu0 %v415
    %454 = vmatprep.subr.mxu0 0.0
    %455 = vmatpush2.msra.mxu0 0.0
    %456 = vmatprep.subr.mxu0 0.0
    %457 = vmatpush2.msra.mxu0 0.0
    %458 = vmatprep.subr.mxu0 0.0
    %459 = vmatpush2.msra.mxu0 0.0
    %460 = vmatprep.subr.mxu0 0.0
    %461 = vmatpush2.msra.mxu0 0.0
    %462 = vmatprep.subr.mxu0 0.0
    %463 = vmatpush2.msra.mxu0 0.0
    %464 = vmatprep.subr.mxu0 0.0
    %465 = vmatpush2.msra.mxu0 0.0
    %466 = vmatprep.subr.mxu0 0.0
    %467 = vmatpush2.msra.mxu0 0.0
    %468 = vmatprep.subr.mxu0 0.0
    %469 = vmatpush2.msra.mxu0 0.0
    %470 = vmatprep.subr.mxu0 0.0
    %471 = vmatpush2.msra.mxu0 0.0
    %472 = vmatprep.subr.mxu0 0.0
    %473 = vmatpush2.msra.mxu0 0.0
    %474 = vmatprep.subr.mxu0 0.0
    %475 = vmatpush2.msra.mxu0 0.0
    %476 = vmatprep.subr.mxu0 0.0
    %477 = vmatpush2.msra.mxu0 0.0
    %478 = vmatprep.subr.mxu0 0.0
    %479 = vmatpush2.msra.mxu0 0.0
    %480 = vmatprep.subr.mxu0 0.0
    %481 = vmatpush2.msra.mxu0 0.0
    %482 = vmatprep.subr.mxu0 0.0
    %483 = vmatpush2.msra.mxu0 0.0
    %484 = vmatprep.subr.mxu0 0.0
    %485 = vmatpush2.msra.mxu0 0.0
    %486 = vmatprep.mubr.f32.mxu0 0.0
    %487 = vmatmul.mubr.f32.gmra.mxu0 %v417
    %v488 = vpop.f32.mrf.mxu0
    %v489 = vadd.f32 0.0, %v488
    %v490 = vpop.f32.mrf.mxu0
    %491 = vmatprep.mubr.f32.mxu0 0.0
    %492 = vmatmul.mubr.f32.gmra.mxu0 %v420
    %v493 = vpop.f32.mrf.mxu0
    %v494 = vadd.f32 0.0, %v493
    %v495 = vpop.f32.mrf.mxu0
    %496 = vdwg.mxu0
    %v497 = vadd.f32 %v406, %v489
    %v498 = vadd.f32 %v411, %v494
    %v499 = vld [vmem:[%s2] sm:$0x1]
    %v501 = vlaneseq
    %v502 = vshrl.u32 %v501, 7
    %v503 = vsub.s32 0, %v502
    %v504 = vrot.slane %v499, %v503
    %v506 = vadd.f32 %v497, %v504
    %v507 = vadd.f32 %v498, %v504
    %v508 = vmax.f32 %v506, 0.0
    %v509 = vmax.f32 %v507, 0.0
    %v510 = vadd.f32 %v508, 0.0
    %v511 = vadd.f32 %v509, 0.0
    %s512 = scalar_lea.vmem %s1, 24
    %v513 = vld [vmem:[%s512] sm:$0xff]
    %s514 = scalar_lea.vmem %s1, 32
    %v515 = vld [vmem:[%s514] sm:$0xff]
    %v517 = vsel %vm251, %v200, 0
    %v520 = vsel %vm251, %v205, 0
    %522 = vmatprep.subr.mxu0 0.0
    %523 = vmatpush1.msra.mxu0 0.0
    %524 = vmatprep.subr.mxu0 0.0
    %525 = vmatpush1.msra.mxu0 0.0
    %526 = vmatprep.subr.mxu0 0.0
    %527 = vmatpush1.msra.mxu0 0.0
    %528 = vmatprep.subr.mxu0 0.0
    %529 = vmatpush1.msra.mxu0 0.0
    %530 = vmatprep.subr.mxu0 0.0
    %531 = vmatpush1.msra.mxu0 0.0
    %532 = vmatprep.subr.mxu0 0.0
    %533 = vmatpush1.msra.mxu0 0.0
    %534 = vmatprep.subr.mxu0 0.0
    %535 = vmatpush1.msra.mxu0 0.0
    %536 = vmatprep.subr.mxu0 0.0
    %537 = vmatpush1.msra.mxu0 0.0
    %538 = vmatprep.subr.mxu0 0.0
    %539 = vmatpush1.msra.mxu0 0.0
    %540 = vmatprep.subr.mxu0 0.0
    %541 = vmatpush1.msra.mxu0 0.0
    %542 = vmatprep.subr.mxu0 0.0
    %543 = vmatpush1.msra.mxu0 0.0
    %544 = vmatprep.subr.mxu0 0.0
    %545 = vmatpush1.msra.mxu0 0.0
    %546 = vmatprep.subr.mxu0 0.0
    %547 = vmatpush1.msra.mxu0 0.0
    %548 = vmatprep.subr.mxu0 0.0
    %549 = vmatpush1.msra.mxu0 0.0
    %550 = vmatprep.subr.mxu0 0.0
    %551 = vmatpush1.msra.mxu0 0.0
    %552 = vmatprep.subr.mxu0 0.0
    %553 = vmatpush1.msra.mxu0 %v515
    %554 = vmatprep.subr.mxu0 0.0
    %555 = vmatpush2.msra.mxu0 0.0
    %556 = vmatprep.subr.mxu0 0.0
    %557 = vmatpush2.msra.mxu0 0.0
    %558 = vmatprep.subr.mxu0 0.0
    %559 = vmatpush2.msra.mxu0 0.0
    %560 = vmatprep.subr.mxu0 0.0
    %561 = vmatpush2.msra.mxu0 0.0
    %562 = vmatprep.subr.mxu0 0.0
    %563 = vmatpush2.msra.mxu0 0.0
    %564 = vmatprep.subr.mxu0 0.0
    %565 = vmatpush2.msra.mxu0 0.0
    %566 = vmatprep.subr.mxu0 0.0
    %567 = vmatpush2.msra.mxu0 0.0
    %568 = vmatprep.subr.mxu0 0.0
    %569 = vmatpush2.msra.mxu0 0.0
    %570 = vmatprep.subr.mxu0 0.0
    %571 = vmatpush2.msra.mxu0 0.0
    %572 = vmatprep.subr.mxu0 0.0
    %573 = vmatpush2.msra.mxu0 0.0
    %574 = vmatprep.subr.mxu0 0.0
    %575 = vmatpush2.msra.mxu0 0.0
    %576 = vmatprep.subr.mxu0 0.0
    %577 = vmatpush2.msra.mxu0 0.0
    %578 = vmatprep.subr.mxu0 0.0
    %579 = vmatpush2.msra.mxu0 0.0
    %580 = vmatprep.subr.mxu0 0.0
    %581 = vmatpush2.msra.mxu0 0.0
    %582 = vmatprep.subr.mxu0 0.0
    %583 = vmatpush2.msra.mxu0 0.0
    %584 = vmatprep.subr.mxu0 0.0
    %585 = vmatpush2.msra.mxu0 0.0
    %586 = vmatprep.mubr.f32.mxu0 0.0
    %587 = vmatmul.mubr.f32.gmra.mxu0 %v517
    %v588 = vpop.f32.mrf.mxu0
    %v589 = vadd.f32 0.0, %v588
    %v590 = vpop.f32.mrf.mxu0
    %591 = vmatprep.mubr.f32.mxu0 0.0
    %592 = vmatmul.mubr.f32.gmra.mxu0 %v520
    %v593 = vpop.f32.mrf.mxu0
    %v594 = vadd.f32 0.0, %v593
    %v595 = vpop.f32.mrf.mxu0
    %596 = vdwg.mxu0
    %v598 = vsel %vm251, %v190, 0
    %v601 = vsel %vm251, %v195, 0
    %603 = vmatprep.subr.mxu0 0.0
    %604 = vmatpush1.msra.mxu0 0.0
    %605 = vmatprep.subr.mxu0 0.0
    %606 = vmatpush1.msra.mxu0 0.0
    %607 = vmatprep.subr.mxu0 0.0
    %608 = vmatpush1.msra.mxu0 0.0
    %609 = vmatprep.subr.mxu0 0.0
    %610 = vmatpush1.msra.mxu0 0.0
    %611 = vmatprep.subr.mxu0 0.0
    %612 = vmatpush1.msra.mxu0 0.0
    %613 = vmatprep.subr.mxu0 0.0
    %614 = vmatpush1.msra.mxu0 0.0
    %615 = vmatprep.subr.mxu0 0.0
    %616 = vmatpush1.msra.mxu0 0.0
    %617 = vmatprep.subr.mxu0 0.0
    %618 = vmatpush1.msra.mxu0 0.0
    %619 = vmatprep.subr.mxu0 0.0
    %620 = vmatpush1.msra.mxu0 0.0
    %621 = vmatprep.subr.mxu0 0.0
    %622 = vmatpush1.msra.mxu0 0.0
    %623 = vmatprep.subr.mxu0 0.0
    %624 = vmatpush1.msra.mxu0 0.0
    %625 = vmatprep.subr.mxu0 0.0
    %626 = vmatpush1.msra.mxu0 0.0
    %627 = vmatprep.subr.mxu0 0.0
    %628 = vmatpush1.msra.mxu0 0.0
    %629 = vmatprep.subr.mxu0 0.0
    %630 = vmatpush1.msra.mxu0 0.0
    %631 = vmatprep.subr.mxu0 0.0
    %632 = vmatpush1.msra.mxu0 0.0
    %633 = vmatprep.subr.mxu0 0.0
    %634 = vmatpush1.msra.mxu0 %v513
    %635 = vmatprep.subr.mxu0 0.0
    %636 = vmatpush2.msra.mxu0 0.0
    %637 = vmatprep.subr.mxu0 0.0
    %638 = vmatpush2.msra.mxu0 0.0
    %639 = vmatprep.subr.mxu0 0.0
    %640 = vmatpush2.msra.mxu0 0.0
    %641 = vmatprep.subr.mxu0 0.0
    %642 = vmatpush2.msra.mxu0 0.0
    %643 = vmatprep.subr.mxu0 0.0
    %644 = vmatpush2.msra.mxu0 0.0
    %645 = vmatprep.subr.mxu0 0.0
    %646 = vmatpush2.msra.mxu0 0.0
    %647 = vmatprep.subr.mxu0 0.0
    %648 = vmatpush2.msra.mxu0 0.0
    %649 = vmatprep.subr.mxu0 0.0
    %650 = vmatpush2.msra.mxu0 0.0
    %651 = vmatprep.subr.mxu0 0.0
    %652 = vmatpush2.msra.mxu0 0.0
    %653 = vmatprep.subr.mxu0 0.0
    %654 = vmatpush2.msra.mxu0 0.0
    %655 = vmatprep.subr.mxu0 0.0
    %656 = vmatpush2.msra.mxu0 0.0
    %657 = vmatprep.subr.mxu0 0.0
    %658 = vmatpush2.msra.mxu0 0.0
    %659 = vmatprep.subr.mxu0 0.0
    %660 = vmatpush2.msra.mxu0 0.0
    %661 = vmatprep.subr.mxu0 0.0
    %662 = vmatpush2.msra.mxu0 0.0
    %663 = vmatprep.subr.mxu0 0.0
    %664 = vmatpush2.msra.mxu0 0.0
    %665 = vmatprep.subr.mxu0 0.0
    %666 = vmatpush2.msra.mxu0 0.0
    %667 = vmatprep.mubr.f32.mxu0 0.0
    %668 = vmatmul.mubr.f32.gmra.mxu0 %v598
    %v669 = vpop.f32.mrf.mxu0
    %v670 = vadd.f32 %v589, %v669
    %v671 = vpop.f32.mrf.mxu0
    %672 = vmatprep.mubr.f32.mxu0 0.0
    %673 = vmatmul.mubr.f32.gmra.mxu0 %v601
    %v674 = vpop.f32.mrf.mxu0
    %v675 = vadd.f32 %v594, %v674
    %v676 = vpop.f32.mrf.mxu0
    %677 = vdwg.mxu0
    %s678 = scalar_lea.vmem %s1, 40
    %v679 = vld [vmem:[%s678] sm:$0xff]
    %v681 = vsel %vm251, %v210, 0
    %v684 = vsel %vm251, %v215, 0
    %686 = vmatprep.subr.mxu0 0.0
    %687 = vmatpush1.msra.mxu0 0.0
    %688 = vmatprep.subr.mxu0 0.0
    %689 = vmatpush1.msra.mxu0 0.0
    %690 = vmatprep.subr.mxu0 0.0
    %691 = vmatpush1.msra.mxu0 0.0
    %692 = vmatprep.subr.mxu0 0.0
    %693 = vmatpush1.msra.mxu0 0.0
    %694 = vmatprep.subr.mxu0 0.0
    %695 = vmatpush1.msra.mxu0 0.0
    %696 = vmatprep.subr.mxu0 0.0
    %697 = vmatpush1.msra.mxu0 0.0
    %698 = vmatprep.subr.mxu0 0.0
    %699 = vmatpush1.msra.mxu0 0.0
    %700 = vmatprep.subr.mxu0 0.0
    %701 = vmatpush1.msra.mxu0 0.0
    %702 = vmatprep.subr.mxu0 0.0
    %703 = vmatpush1.msra.mxu0 0.0
    %704 = vmatprep.subr.mxu0 0.0
    %705 = vmatpush1.msra.mxu0 0.0
    %706 = vmatprep.subr.mxu0 0.0
    %707 = vmatpush1.msra.mxu0 0.0
    %708 = vmatprep.subr.mxu0 0.0
    %709 = vmatpush1.msra.mxu0 0.0
    %710 = vmatprep.subr.mxu0 0.0
    %711 = vmatpush1.msra.mxu0 0.0
    %712 = vmatprep.subr.mxu0 0.0
    %713 = vmatpush1.msra.mxu0 0.0
    %714 = vmatprep.subr.mxu0 0.0
    %715 = vmatpush1.msra.mxu0 0.0
    %716 = vmatprep.subr.mxu0 0.0
    %717 = vmatpush1.msra.mxu0 %v679
    %718 = vmatprep.subr.mxu0 0.0
    %719 = vmatpush2.msra.mxu0 0.0
    %720 = vmatprep.subr.mxu0 0.0
    %721 = vmatpush2.msra.mxu0 0.0
    %722 = vmatprep.subr.mxu0 0.0
    %723 = vmatpush2.msra.mxu0 0.0
    %724 = vmatprep.subr.mxu0 0.0
    %725 = vmatpush2.msra.mxu0 0.0
    %726 = vmatprep.subr.mxu0 0.0
    %727 = vmatpush2.msra.mxu0 0.0
    %728 = vmatprep.subr.mxu0 0.0
    %729 = vmatpush2.msra.mxu0 0.0
    %730 = vmatprep.subr.mxu0 0.0
    %731 = vmatpush2.msra.mxu0 0.0
    %732 = vmatprep.subr.mxu0 0.0
    %733 = vmatpush2.msra.mxu0 0.0
    %734 = vmatprep.subr.mxu0 0.0
    %735 = vmatpush2.msra.mxu0 0.0
    %736 = vmatprep.subr.mxu0 0.0
    %737 = vmatpush2.msra.mxu0 0.0
    %738 = vmatprep.subr.mxu0 0.0
    %739 = vmatpush2.msra.mxu0 0.0
    %740 = vmatprep.subr.mxu0 0.0
    %741 = vmatpush2.msra.mxu0 0.0
    %742 = vmatprep.subr.mxu0 0.0
    %743 = vmatpush2.msra.mxu0 0.0
    %744 = vmatprep.subr.mxu0 0.0
    %745 = vmatpush2.msra.mxu0 0.0
    %746 = vmatprep.subr.mxu0 0.0
    %747 = vmatpush2.msra.mxu0 0.0
    %748 = vmatprep.subr.mxu0 0.0
    %749 = vmatpush2.msra.mxu0 0.0
    %750 = vmatprep.mubr.f32.mxu0 0.0
    %751 = vmatmul.mubr.f32.gmra.mxu0 %v681
    %v752 = vpop.f32.mrf.mxu0
    %v753 = vadd.f32 0.0, %v752
    %v754 = vpop.f32.mrf.mxu0
    %755 = vmatprep.mubr.f32.mxu0 0.0
    %756 = vmatmul.mubr.f32.gmra.mxu0 %v684
    %v757 = vpop.f32.mrf.mxu0
    %v758 = vadd.f32 0.0, %v757
    %v759 = vpop.f32.mrf.mxu0
    %760 = vdwg.mxu0
    %v761 = vadd.f32 %v670, %v753
    %v762 = vadd.f32 %v675, %v758
    %s763 = scalar_lea.vmem %s2, 1
    %v764 = vld [vmem:[%s763] sm:$0x1]
    %v766 = vlaneseq
    %v767 = vshrl.u32 %v766, 7
    %v768 = vsub.s32 0, %v767
    %v769 = vrot.slane %v764, %v768
    %v771 = vadd.f32 %v761, %v769
    %v772 = vadd.f32 %v762, %v769
    %v773 = vmax.f32 %v771, 0.0
    %v774 = vmax.f32 %v772, 0.0
    %v775 = vadd.f32 %v510, %v773
    %v776 = vadd.f32 %v511, %v774
    %s777 = scalar_lea.vmem %s1, 48
    %v778 = vld [vmem:[%s777] sm:$0xff]
    %s779 = scalar_lea.vmem %s1, 56
    %v780 = vld [vmem:[%s779] sm:$0xff]
    %v782 = vsel %vm251, %v230, 0
    %v785 = vsel %vm251, %v235, 0
    %787 = vmatprep.subr.mxu0 0.0
    %788 = vmatpush1.msra.mxu0 0.0
    %789 = vmatprep.subr.mxu0 0.0
    %790 = vmatpush1.msra.mxu0 0.0
    %791 = vmatprep.subr.mxu0 0.0
    %792 = vmatpush1.msra.mxu0 0.0
    %793 = vmatprep.subr.mxu0 0.0
    %794 = vmatpush1.msra.mxu0 0.0
    %795 = vmatprep.subr.mxu0 0.0
    %796 = vmatpush1.msra.mxu0 0.0
    %797 = vmatprep.subr.mxu0 0.0
    %798 = vmatpush1.msra.mxu0 0.0
    %799 = vmatprep.subr.mxu0 0.0
    %800 = vmatpush1.msra.mxu0 0.0
    %801 = vmatprep.subr.mxu0 0.0
    %802 = vmatpush1.msra.mxu0 0.0
    %803 = vmatprep.subr.mxu0 0.0
    %804 = vmatpush1.msra.mxu0 0.0
    %805 = vmatprep.subr.mxu0 0.0
    %806 = vmatpush1.msra.mxu0 0.0
    %807 = vmatprep.subr.mxu0 0.0
    %808 = vmatpush1.msra.mxu0 0.0
    %809 = vmatprep.subr.mxu0 0.0
    %810 = vmatpush1.msra.mxu0 0.0
    %811 = vmatprep.subr.mxu0 0.0
    %812 = vmatpush1.msra.mxu0 0.0
    %813 = vmatprep.subr.mxu0 0.0
    %814 = vmatpush1.msra.mxu0 0.0
    %815 = vmatprep.subr.mxu0 0.0
    %816 = vmatpush1.msra.mxu0 0.0
    %817 = vmatprep.subr.mxu0 0.0
    %818 = vmatpush1.msra.mxu0 %v780
    %819 = vmatprep.subr.mxu0 0.0
    %820 = vmatpush2.msra.mxu0 0.0
    %821 = vmatprep.subr.mxu0 0.0
    %822 = vmatpush2.msra.mxu0 0.0
    %823 = vmatprep.subr.mxu0 0.0
    %824 = vmatpush2.msra.mxu0 0.0
    %825 = vmatprep.subr.mxu0 0.0
    %826 = vmatpush2.msra.mxu0 0.0
    %827 = vmatprep.subr.mxu0 0.0
    %828 = vmatpush2.msra.mxu0 0.0
    %829 = vmatprep.subr.mxu0 0.0
    %830 = vmatpush2.msra.mxu0 0.0
    %831 = vmatprep.subr.mxu0 0.0
    %832 = vmatpush2.msra.mxu0 0.0
    %833 = vmatprep.subr.mxu0 0.0
    %834 = vmatpush2.msra.mxu0 0.0
    %835 = vmatprep.subr.mxu0 0.0
    %836 = vmatpush2.msra.mxu0 0.0
    %837 = vmatprep.subr.mxu0 0.0
    %838 = vmatpush2.msra.mxu0 0.0
    %839 = vmatprep.subr.mxu0 0.0
    %840 = vmatpush2.msra.mxu0 0.0
    %841 = vmatprep.subr.mxu0 0.0
    %842 = vmatpush2.msra.mxu0 0.0
    %843 = vmatprep.subr.mxu0 0.0
    %844 = vmatpush2.msra.mxu0 0.0
    %845 = vmatprep.subr.mxu0 0.0
    %846 = vmatpush2.msra.mxu0 0.0
    %847 = vmatprep.subr.mxu0 0.0
    %848 = vmatpush2.msra.mxu0 0.0
    %849 = vmatprep.subr.mxu0 0.0
    %850 = vmatpush2.msra.mxu0 0.0
    %851 = vmatprep.mubr.f32.mxu0 0.0
    %852 = vmatmul.mubr.f32.gmra.mxu0 %v782
    %v853 = vpop.f32.mrf.mxu0
    %v854 = vadd.f32 0.0, %v853
    %v855 = vpop.f32.mrf.mxu0
    %856 = vmatprep.mubr.f32.mxu0 0.0
    %857 = vmatmul.mubr.f32.gmra.mxu0 %v785
    %v858 = vpop.f32.mrf.mxu0
    %v859 = vadd.f32 0.0, %v858
    %v860 = vpop.f32.mrf.mxu0
    %861 = vdwg.mxu0
    %v863 = vsel %vm251, %v220, 0
    %v866 = vsel %vm251, %v225, 0
    %868 = vmatprep.subr.mxu0 0.0
    %869 = vmatpush1.msra.mxu0 0.0
    %870 = vmatprep.subr.mxu0 0.0
    %871 = vmatpush1.msra.mxu0 0.0
    %872 = vmatprep.subr.mxu0 0.0
    %873 = vmatpush1.msra.mxu0 0.0
    %874 = vmatprep.subr.mxu0 0.0
    %875 = vmatpush1.msra.mxu0 0.0
    %876 = vmatprep.subr.mxu0 0.0
    %877 = vmatpush1.msra.mxu0 0.0
    %878 = vmatprep.subr.mxu0 0.0
    %879 = vmatpush1.msra.mxu0 0.0
    %880 = vmatprep.subr.mxu0 0.0
    %881 = vmatpush1.msra.mxu0 0.0
    %882 = vmatprep.subr.mxu0 0.0
    %883 = vmatpush1.msra.mxu0 0.0
    %884 = vmatprep.subr.mxu0 0.0
    %885 = vmatpush1.msra.mxu0 0.0
    %886 = vmatprep.subr.mxu0 0.0
    %887 = vmatpush1.msra.mxu0 0.0
    %888 = vmatprep.subr.mxu0 0.0
    %889 = vmatpush1.msra.mxu0 0.0
    %890 = vmatprep.subr.mxu0 0.0
    %891 = vmatpush1.msra.mxu0 0.0
    %892 = vmatprep.subr.mxu0 0.0
    %893 = vmatpush1.msra.mxu0 0.0
    %894 = vmatprep.subr.mxu0 0.0
    %895 = vmatpush1.msra.mxu0 0.0
    %896 = vmatprep.subr.mxu0 0.0
    %897 = vmatpush1.msra.mxu0 0.0
    %898 = vmatprep.subr.mxu0 0.0
    %899 = vmatpush1.msra.mxu0 %v778
    %900 = vmatprep.subr.mxu0 0.0
    %901 = vmatpush2.msra.mxu0 0.0
    %902 = vmatprep.subr.mxu0 0.0
    %903 = vmatpush2.msra.mxu0 0.0
    %904 = vmatprep.subr.mxu0 0.0
    %905 = vmatpush2.msra.mxu0 0.0
    %906 = vmatprep.subr.mxu0 0.0
    %907 = vmatpush2.msra.mxu0 0.0
    %908 = vmatprep.subr.mxu0 0.0
    %909 = vmatpush2.msra.mxu0 0.0
    %910 = vmatprep.subr.mxu0 0.0
    %911 = vmatpush2.msra.mxu0 0.0
    %912 = vmatprep.subr.mxu0 0.0
    %913 = vmatpush2.msra.mxu0 0.0
    %914 = vmatprep.subr.mxu0 0.0
    %915 = vmatpush2.msra.mxu0 0.0
    %916 = vmatprep.subr.mxu0 0.0
    %917 = vmatpush2.msra.mxu0 0.0
    %918 = vmatprep.subr.mxu0 0.0
    %919 = vmatpush2.msra.mxu0 0.0
    %920 = vmatprep.subr.mxu0 0.0
    %921 = vmatpush2.msra.mxu0 0.0
    %922 = vmatprep.subr.mxu0 0.0
    %923 = vmatpush2.msra.mxu0 0.0
    %924 = vmatprep.subr.mxu0 0.0
    %925 = vmatpush2.msra.mxu0 0.0
    %926 = vmatprep.subr.mxu0 0.0
    %927 = vmatpush2.msra.mxu0 0.0
    %928 = vmatprep.subr.mxu0 0.0
    %929 = vmatpush2.msra.mxu0 0.0
    %930 = vmatprep.subr.mxu0 0.0
    %931 = vmatpush2.msra.mxu0 0.0
    %932 = vmatprep.mubr.f32.mxu0 0.0
    %933 = vmatmul.mubr.f32.gmra.mxu0 %v863
    %v934 = vpop.f32.mrf.mxu0
    %v935 = vadd.f32 %v854, %v934
    %v936 = vpop.f32.mrf.mxu0
    %937 = vmatprep.mubr.f32.mxu0 0.0
    %938 = vmatmul.mubr.f32.gmra.mxu0 %v866
    %v939 = vpop.f32.mrf.mxu0
    %v940 = vadd.f32 %v859, %v939
    %v941 = vpop.f32.mrf.mxu0
    %942 = vdwg.mxu0
    %s943 = scalar_lea.vmem %s1, 64
    %v944 = vld [vmem:[%s943] sm:$0xff]
    %v946 = vsel %vm251, %v240, 0
    %v949 = vsel %vm251, %v245, 0
    %951 = vmatprep.subr.mxu0 0.0
    %952 = vmatpush1.msra.mxu0 0.0
    %953 = vmatprep.subr.mxu0 0.0
    %954 = vmatpush1.msra.mxu0 0.0
    %955 = vmatprep.subr.mxu0 0.0
    %956 = vmatpush1.msra.mxu0 0.0
    %957 = vmatprep.subr.mxu0 0.0
    %958 = vmatpush1.msra.mxu0 0.0
    %959 = vmatprep.subr.mxu0 0.0
    %960 = vmatpush1.msra.mxu0 0.0
    %961 = vmatprep.subr.mxu0 0.0
    %962 = vmatpush1.msra.mxu0 0.0
    %963 = vmatprep.subr.mxu0 0.0
    %964 = vmatpush1.msra.mxu0 0.0
    %965 = vmatprep.subr.mxu0 0.0
    %966 = vmatpush1.msra.mxu0 0.0
    %967 = vmatprep.subr.mxu0 0.0
    %968 = vmatpush1.msra.mxu0 0.0
    %969 = vmatprep.subr.mxu0 0.0
    %970 = vmatpush1.msra.mxu0 0.0
    %971 = vmatprep.subr.mxu0 0.0
    %972 = vmatpush1.msra.mxu0 0.0
    %973 = vmatprep.subr.mxu0 0.0
    %974 = vmatpush1.msra.mxu0 0.0
    %975 = vmatprep.subr.mxu0 0.0
    %976 = vmatpush1.msra.mxu0 0.0
    %977 = vmatprep.subr.mxu0 0.0
    %978 = vmatpush1.msra.mxu0 0.0
    %979 = vmatprep.subr.mxu0 0.0
    %980 = vmatpush1.msra.mxu0 0.0
    %981 = vmatprep.subr.mxu0 0.0
    %982 = vmatpush1.msra.mxu0 %v944
    %983 = vmatprep.subr.mxu0 0.0
    %984 = vmatpush2.msra.mxu0 0.0
    %985 = vmatprep.subr.mxu0 0.0
    %986 = vmatpush2.msra.mxu0 0.0
    %987 = vmatprep.subr.mxu0 0.0
    %988 = vmatpush2.msra.mxu0 0.0
    %989 = vmatprep.subr.mxu0 0.0
    %990 = vmatpush2.msra.mxu0 0.0
    %991 = vmatprep.subr.mxu0 0.0
    %992 = vmatpush2.msra.mxu0 0.0
    %993 = vmatprep.subr.mxu0 0.0
    %994 = vmatpush2.msra.mxu0 0.0
    %995 = vmatprep.subr.mxu0 0.0
    %996 = vmatpush2.msra.mxu0 0.0
    %997 = vmatprep.subr.mxu0 0.0
    %998 = vmatpush2.msra.mxu0 0.0
    %999 = vmatprep.subr.mxu0 0.0
    %1000 = vmatpush2.msra.mxu0 0.0
    %1001 = vmatprep.subr.mxu0 0.0
    %1002 = vmatpush2.msra.mxu0 0.0
    %1003 = vmatprep.subr.mxu0 0.0
    %1004 = vmatpush2.msra.mxu0 0.0
    %1005 = vmatprep.subr.mxu0 0.0
    %1006 = vmatpush2.msra.mxu0 0.0
    %1007 = vmatprep.subr.mxu0 0.0
    %1008 = vmatpush2.msra.mxu0 0.0
    %1009 = vmatprep.subr.mxu0 0.0
    %1010 = vmatpush2.msra.mxu0 0.0
    %1011 = vmatprep.subr.mxu0 0.0
    %1012 = vmatpush2.msra.mxu0 0.0
    %1013 = vmatprep.subr.mxu0 0.0
    %1014 = vmatpush2.msra.mxu0 0.0
    %1015 = vmatprep.mubr.f32.mxu0 0.0
    %1016 = vmatmul.mubr.f32.gmra.mxu0 %v946
    %v1017 = vpop.f32.mrf.mxu0
    %v1018 = vadd.f32 0.0, %v1017
    %v1019 = vpop.f32.mrf.mxu0
    %1020 = vmatprep.mubr.f32.mxu0 0.0
    %1021 = vmatmul.mubr.f32.gmra.mxu0 %v949
    %v1022 = vpop.f32.mrf.mxu0
    %v1023 = vadd.f32 0.0, %v1022
    %v1024 = vpop.f32.mrf.mxu0
    %1025 = vdwg.mxu0
    %v1026 = vadd.f32 %v935, %v1018
    %v1027 = vadd.f32 %v940, %v1023
    %s1028 = scalar_lea.vmem %s2, 2
    %v1029 = vld [vmem:[%s1028] sm:$0x1]
    %v1031 = vlaneseq
    %v1032 = vshrl.u32 %v1031, 7
    %v1033 = vsub.s32 0, %v1032
    %v1034 = vrot.slane %v1029, %v1033
    %v1036 = vadd.f32 %v1026, %v1034
    %v1037 = vadd.f32 %v1027, %v1034
    %v1038 = vmax.f32 %v1036, 0.0
    %v1039 = vmax.f32 %v1037, 0.0
    %v1040 = vadd.f32 %v775, %v1038
    %v1041 = vadd.f32 %v776, %v1039
    %vm1042 = vcmask 523264
    %1043 = vst.msk [vmem:[#allocation2] sm:$0xff] %vm1042, %v1040
    %1044 = vst.msk [vmem:[#allocation2 + $0x8] sm:$0xff] %vm1042, %v1041
    // Predicated region
    $region18: #{tpu_custom_call.1} parent=1 // pred_check
      _
    $region19: #{tpu_custom_call.1} parent=1 // pred_check_branch
      %1046 = sbr.rel (0) target = $region21
    $region20: #{tpu_custom_call.1} parent=1 // pred_region
      %s1048 = ssub.s32 256, 256
      %1049 = vsyncadd [#allocation3], %s1048
      %s1050 = sshll.u32 [#allocation2], 4
      %s1051 = int_to_ptr.vmem [resolvable:$true] %s1050
      %1056 = dma.vmem_to_hbm [thread:$0]  %s1051, 256, %s4, [#allocation3], 128, 128, 8
    $region21: #{tpu_custom_call.1} parent=1 // pred_fallthru
      _
    // Predicated region
    $region22: #{tpu_custom_call.1} parent=1 // pred_check
      _
    $region23: #{tpu_custom_call.1} parent=1 // pred_check_branch
      %1058 = sbr.rel (0) target = $region25
    $region24: #{tpu_custom_call.1} parent=1 // pred_region
      %1059 = dma.done [#allocation3], 256
    $region25: #{tpu_custom_call.1} parent=1 // pred_fallthru
      _
    %1060 = vsyncpa [#allocation3], 1

</llo_original>
